<compile_context>
chip_gen: v7x
topology: tpu7x:2x2x1
jax: 0.10.0
libtpu: 0.0.40
codegen_flags: <defaults>
</compile_context>

<pallas_src>
import math

import jax
import jax.numpy as jnp
from jax.experimental import pallas as pl
from jax.experimental.pallas import tpu as pltpu

LANE = 128


def _round_up(a, b):
    return ((a + b - 1) // b) * b


def psnn_conv_kernel(ll_ref, lu_ref, xk_ref, xi_ref, w_ref, o_ref,
                     acc_l_ref, acc_u_ref):
    k = pl.program_id(1)

    @pl.when(k == 0)
    def _init():
        acc_l_ref[...] = jnp.zeros_like(acc_l_ref)
        acc_u_ref[...] = jnp.zeros_like(acc_u_ref)

    # Both Laplacian tiles contract against the same x tile (shared MXU RHS).
    xk = xk_ref[...]
    acc_l_ref[...] += jnp.dot(ll_ref[...], xk, preferred_element_type=jnp.float32)
    acc_u_ref[...] += jnp.dot(lu_ref[...], xk, preferred_element_type=jnp.float32)

    @pl.when(k == pl.num_programs(1) - 1)
    def _finalize():
        # Fused epilogue: Z = [x | Ll@x | Lu@x]; one K=384 matmul replaces
        # three K=128 matmuls plus two VPU adds (accumulation stays in MXU).
        z = jnp.concatenate(
            [xi_ref[...].astype(jnp.float32), acc_l_ref[...], acc_u_ref[...]],
            axis=1,
        )
        o_ref[...] = jnp.dot(
            z, w_ref[...], preferred_element_type=jnp.float32
        ).astype(o_ref.dtype)


def psnn_conv_forward(x, Ll, Lu, W0, W1, W2, *, tm=256, tk=1024):
    M, F_in = x.shape
    F_out = W0.shape[1]
    dtype = x.dtype

    # Lane-dense feature padding (F_in=8 / F_out=16 would use <13% of lanes and
    # force masked vst.msk output stores).
    F_in_p = _round_up(F_in, LANE)
    F_out_p = _round_up(F_out, LANE)

    # Clamp tiles to the (lane-rounded) problem size, then pad M so both tile
    # sizes divide it.
    r = _round_up(M, LANE)
    tm = min(tm, r)
    tk = min(tk, r)
    M_p = _round_up(M, tm * tk // math.gcd(tm, tk))

    # Feature padding is always required (tiny copies).  The O(M^2) Laplacians
    # are only copied/padded when M is not already tile-aligned, so the common
    # aligned case avoids an extra full HBM round-trip of the dominant data.
    x_p = jnp.zeros((M_p, F_in_p), dtype).at[:M, :F_in].set(x)
    if M_p == M:
        Ll_p = Ll.astype(dtype)
        Lu_p = Lu.astype(dtype)
    else:
        Ll_p = jnp.zeros((M_p, M_p), dtype).at[:M, :M].set(Ll)
        Lu_p = jnp.zeros((M_p, M_p), dtype).at[:M, :M].set(Lu)

    # Concatenated weights: Wcat = [[W0],[W1],[W2]] with zero padding
    # (padding rows/cols are zero => mathematically inert).
    Wcat = (
        jnp.zeros((3 * F_in_p, F_out_p), dtype)
        .at[0 * F_in_p:0 * F_in_p + F_in, :F_out].set(W0)
        .at[1 * F_in_p:1 * F_in_p + F_in, :F_out].set(W1)
        .at[2 * F_in_p:2 * F_in_p + F_in, :F_out].set(W2)
    )

    grid = (M_p // tm, M_p // tk)

    out_p = pl.pallas_call(
        psnn_conv_kernel,
        out_shape=jax.ShapeDtypeStruct((M_p, F_out_p), dtype),
        grid_spec=pltpu.PrefetchScalarGridSpec(
            num_scalar_prefetch=0,
            grid=grid,
            in_specs=[
                # Lower / upper Laplacian tiles, streamed per (i, k).
                pl.BlockSpec((tm, tk), lambda i, k: (i, k)),
                pl.BlockSpec((tm, tk), lambda i, k: (i, k)),
                # x, contraction operand (rows indexed by k).
                pl.BlockSpec((tk, F_in_p), lambda i, k: (k, 0)),
                # x, identity-term row tile (rows indexed by i; DMA'd once per i).
                pl.BlockSpec((tm, F_in_p), lambda i, k: (i, 0)),
                # Concatenated weights, resident for the whole grid.
                pl.BlockSpec((3 * F_in_p, F_out_p), lambda i, k: (0, 0)),
            ],
            out_specs=pl.BlockSpec((tm, F_out_p), lambda i, k: (i, 0)),
            scratch_shapes=[
                pltpu.VMEM((tm, F_in_p), jnp.float32),  # acc for Ll @ x
                pltpu.VMEM((tm, F_in_p), jnp.float32),  # acc for Lu @ x
            ],
        ),
        compiler_params=pltpu.CompilerParams(
            dimension_semantics=("parallel", "arbitrary"),
        ),
    )(Ll_p, Lu_p, x_p, x_p, Wcat)

    return out_p[:M, :F_out]


def xavier_uniform(key, shape, gain):
    fan_in, fan_out = shape
    bound = gain * jnp.sqrt(6.0 / (fan_in + fan_out))
    return jax.random.uniform(key, shape, jnp.float32, -bound, bound)


if __name__ == "__main__":
    key = jax.random.PRNGKey(0)
    k_x, k_ll, k_lu, k_w0, k_w1, k_w2 = jax.random.split(key, 6)

    M = 16        # number of edges / simplices
    F_in = 8      # input features
    F_out = 16    # output features

    x = jax.random.normal(k_x, (M, F_in), jnp.float32)

    # Deterministic synthetic (symmetric) lower/upper Laplacians.
    A_l = jax.random.normal(k_ll, (M, M), jnp.float32)
    A_u = jax.random.normal(k_lu, (M, M), jnp.float32)
    Ll = 0.5 * (A_l + A_l.T)
    Lu = 0.5 * (A_u + A_u.T)

    gain = jnp.sqrt(2.0)  # nn.init.calculate_gain('relu')
    W0 = xavier_uniform(k_w0, (F_in, F_out), gain)
    W1 = xavier_uniform(k_w1, (F_in, F_out), gain)
    W2 = xavier_uniform(k_w2, (F_in, F_out), gain)

    fwd = jax.jit(psnn_conv_forward)
    out = fwd(x, Ll, Lu, W0, W1, W2)
    out = jax.block_until_ready(out)

    # Pure-JAX reference (mirrors the PyTorch forward; I @ x == x).
    ref = x @ W0 + (Ll @ x) @ W1 + (Lu @ x) @ W2
    assert out.shape == (M, F_out)
    assert jnp.allclose(out, ref, atol=1e-4, rtol=1e-4)

    print("KERNEL_OK")
</pallas_src>

<mosaic_0001>
module attributes {stable_mosaic.version = 11 : i64} {
  func.func @psnn_conv_kernel(%arg0: i32, %arg1: i32, %arg2: memref<128x128xf32, #tpu.memory_space<vmem>>, %arg3: memref<128x128xf32, #tpu.memory_space<vmem>>, %arg4: memref<128x128xf32, #tpu.memory_space<vmem>>, %arg5: memref<128x128xf32, #tpu.memory_space<vmem>>, %arg6: memref<384x128xf32, #tpu.memory_space<vmem>>, %arg7: memref<128x128xf32, #tpu.memory_space<vmem>>, %arg8: memref<128x128xf32, #tpu.memory_space<vmem>>, %arg9: memref<128x128xf32, #tpu.memory_space<vmem>>) attributes {dimension_semantics = [#tpu.dimension_semantics<parallel>, #tpu.dimension_semantics<arbitrary>], iteration_bounds = array<i64: 1, 1>, scalar_prefetch = 0 : i64, scratch_operands = 2 : i64, tpu.core_type = #tpu.core_type<tc>, window_params = [{transform_indices = @transform_0, window_bounds = array<i64: 128, 128>}, {transform_indices = @transform_1, window_bounds = array<i64: 128, 128>}, {transform_indices = @transform_2, window_bounds = array<i64: 128, 128>}, {transform_indices = @transform_3, window_bounds = array<i64: 128, 128>}, {pipeline_mode = #tpu.pipeline_mode<synchronous>, transform_indices = @transform_4, window_bounds = array<i64: 384, 128>}, {transform_indices = @transform_5, window_bounds = array<i64: 128, 128>}]} {
    %c0_i32 = arith.constant 0 : i32
    %0 = arith.cmpi eq, %arg1, %c0_i32 : i32
    %1 = arith.extui %0 : i1 to i32
    %c0_i32_0 = arith.constant 0 : i32
    %2 = arith.cmpi ne, %1, %c0_i32_0 : i32
    scf.if %2 {
      %cst_17 = arith.constant 0.000000e+00 : f32
      %17 = vector.broadcast %cst_17 : f32 to vector<128x128xf32>
      %c0_18 = arith.constant 0 : index
      %c0_19 = arith.constant 0 : index
      %18 = vector.load %arg8[%c0_18, %c0_19] : memref<128x128xf32, #tpu.memory_space<vmem>>, vector<128x128xf32>
      tpu.vector_store %arg8[%c0_18, %c0_19], %17 {strides = array<i32>} : memref<128x128xf32, #tpu.memory_space<vmem>>, vector<128x128xf32>,
      %cst_20 = arith.constant 0.000000e+00 : f32
      %19 = vector.broadcast %cst_20 : f32 to vector<128x128xf32>
      %c0_21 = arith.constant 0 : index
      %c0_22 = arith.constant 0 : index
      %20 = vector.load %arg9[%c0_21, %c0_22] : memref<128x128xf32, #tpu.memory_space<vmem>>, vector<128x128xf32>
      tpu.vector_store %arg9[%c0_21, %c0_22], %19 {strides = array<i32>} : memref<128x128xf32, #tpu.memory_space<vmem>>, vector<128x128xf32>,
    } else {
    }
    %c0 = arith.constant 0 : index
    %c0_1 = arith.constant 0 : index
    %3 = vector.load %arg4[%c0, %c0_1] : memref<128x128xf32, #tpu.memory_space<vmem>>, vector<128x128xf32>
    %c0_2 = arith.constant 0 : index
    %c0_3 = arith.constant 0 : index
    %4 = vector.load %arg8[%c0_2, %c0_3] : memref<128x128xf32, #tpu.memory_space<vmem>>, vector<128x128xf32>
    %c0_4 = arith.constant 0 : index
    %c0_5 = arith.constant 0 : index
    %5 = vector.load %arg2[%c0_4, %c0_5] : memref<128x128xf32, #tpu.memory_space<vmem>>, vector<128x128xf32>
    %cst = arith.constant dense<0.000000e+00> : vector<128x128xf32>
    %6 = tpu.matmul %5, %3, %cst {dimension_numbers = #tpu.dot_dimension_numbers<[1], [0], [0], [1], [0, 0, 1, 1], [], []>} : vector<128x128xf32>, vector<128x128xf32>, vector<128x128xf32> -> vector<128x128xf32>
    %7 = arith.addf %4, %6 : vector<128x128xf32>
    %c0_6 = arith.constant 0 : index
    %c0_7 = arith.constant 0 : index
    %8 = vector.load %arg8[%c0_6, %c0_7] : memref<128x128xf32, #tpu.memory_space<vmem>>, vector<128x128xf32>
    tpu.vector_store %arg8[%c0_6, %c0_7], %7 {strides = array<i32>} : memref<128x128xf32, #tpu.memory_space<vmem>>, vector<128x128xf32>,
    %c0_8 = arith.constant 0 : index
    %c0_9 = arith.constant 0 : index
    %9 = vector.load %arg9[%c0_8, %c0_9] : memref<128x128xf32, #tpu.memory_space<vmem>>, vector<128x128xf32>
    %c0_10 = arith.constant 0 : index
    %c0_11 = arith.constant 0 : index
    %10 = vector.load %arg3[%c0_10, %c0_11] : memref<128x128xf32, #tpu.memory_space<vmem>>, vector<128x128xf32>
    %cst_12 = arith.constant dense<0.000000e+00> : vector<128x128xf32>
    %11 = tpu.matmul %10, %3, %cst_12 {dimension_numbers = #tpu.dot_dimension_numbers<[1], [0], [0], [1], [0, 0, 1, 1], [], []>} : vector<128x128xf32>, vector<128x128xf32>, vector<128x128xf32> -> vector<128x128xf32>
    %12 = arith.addf %9, %11 : vector<128x128xf32>
    %c0_13 = arith.constant 0 : index
    %c0_14 = arith.constant 0 : index
    %13 = vector.load %arg9[%c0_13, %c0_14] : memref<128x128xf32, #tpu.memory_space<vmem>>, vector<128x128xf32>
    tpu.vector_store %arg9[%c0_13, %c0_14], %12 {strides = array<i32>} : memref<128x128xf32, #tpu.memory_space<vmem>>, vector<128x128xf32>,
    %c0_i32_15 = arith.constant 0 : i32
    %14 = arith.cmpi eq, %arg1, %c0_i32_15 : i32
    %15 = arith.extui %14 : i1 to i32
    %c0_i32_16 = arith.constant 0 : i32
    %16 = arith.cmpi ne, %15, %c0_i32_16 : i32
    scf.if %16 {
      %c0_17 = arith.constant 0 : index
      %c0_18 = arith.constant 0 : index
      %17 = vector.load %arg5[%c0_17, %c0_18] : memref<128x128xf32, #tpu.memory_space<vmem>>, vector<128x128xf32>
      %c0_19 = arith.constant 0 : index
      %c0_20 = arith.constant 0 : index
      %18 = vector.load %arg8[%c0_19, %c0_20] : memref<128x128xf32, #tpu.memory_space<vmem>>, vector<128x128xf32>
      %c0_21 = arith.constant 0 : index
      %c0_22 = arith.constant 0 : index
      %19 = vector.load %arg9[%c0_21, %c0_22] : memref<128x128xf32, #tpu.memory_space<vmem>>, vector<128x128xf32>
      %20 = tpu.concatenate %17, %18, %19 in 1 : vector<128x128xf32>, vector<128x128xf32>, vector<128x128xf32> -> vector<128x384xf32>
      %c0_23 = arith.constant 0 : index
      %c0_24 = arith.constant 0 : index
      %21 = vector.load %arg6[%c0_23, %c0_24] : memref<384x128xf32, #tpu.memory_space<vmem>>, vector<384x128xf32>
      %cst_25 = arith.constant dense<0.000000e+00> : vector<128x128xf32>
      %22 = tpu.matmul %20, %21, %cst_25 {dimension_numbers = #tpu.dot_dimension_numbers<[1], [0], [0], [1], [0, 0, 1, 1], [], []>} : vector<128x384xf32>, vector<384x128xf32>, vector<128x128xf32> -> vector<128x128xf32>
      %c0_26 = arith.constant 0 : index
      %c0_27 = arith.constant 0 : index
      %23 = vector.load %arg7[%c0_26, %c0_27] : memref<128x128xf32, #tpu.memory_space<vmem>>, vector<128x128xf32>
      tpu.vector_store %arg7[%c0_26, %c0_27], %22 {strides = array<i32>} : memref<128x128xf32, #tpu.memory_space<vmem>>, vector<128x128xf32>,
    } else {
    }
    return
  }
  func.func @transform_0(%arg0: i32, %arg1: i32) -> (i32, i32) {
    %c0_i32 = arith.constant 0 : i32
    return %arg0, %arg1 : i32, i32
  }
  func.func @transform_1(%arg0: i32, %arg1: i32) -> (i32, i32) {
    %c0_i32 = arith.constant 0 : i32
    return %arg0, %arg1 : i32, i32
  }
  func.func @transform_2(%arg0: i32, %arg1: i32) -> (i32, i32) {
    %c0_i32 = arith.constant 0 : i32
    %c0_i32_0 = arith.constant 0 : i32
    return %arg1, %c0_i32 : i32, i32
  }
  func.func @transform_3(%arg0: i32, %arg1: i32) -> (i32, i32) {
    %c0_i32 = arith.constant 0 : i32
    %c0_i32_0 = arith.constant 0 : i32
    return %arg0, %c0_i32 : i32, i32
  }
  func.func @transform_4(%arg0: i32, %arg1: i32) -> (i32, i32) {
    %c0_i32 = arith.constant 0 : i32
    %c0_i32_0 = arith.constant 0 : i32
    %c0_i32_1 = arith.constant 0 : i32
    return %c0_i32, %c0_i32_0 : i32, i32
  }
  func.func @transform_5(%arg0: i32, %arg1: i32) -> (i32, i32) {
    %c0_i32 = arith.constant 0 : i32
    %c0_i32_0 = arith.constant 0 : i32
    return %arg0, %c0_i32 : i32, i32
  }
}

</mosaic_0001>

<llo_original>
// kernel: psnn_conv_forward.1
$region0: #{psnn_conv_forward.1}
  #allocation0 [shape = 'u32[]', space=smem, size = 0x4, offset = 0x4, fixed_abs, tag = 'smem constant byte address 0x4 - core index']
  #allocation1 [shape = 'u32[144,128]{1,0:T(1,128)}', space=vmem, size = 0x12000, scoped, tag = 'internal scratch']
  #allocation2 [shape = 'f32[128,128]{1,0:T(8,128)}', space=vmem, size = 0x10000, scoped, tag = 'scratch operand']
  #allocation3 [shape = 'f32[128,128]{1,0:T(8,128)}', space=vmem, size = 0x10000, scoped, tag = 'scratch operand']
  %s0 = inlined_call_operand.vmem [shape: f32[128,128], index: 0, kind: input, shape index: {}]
  %s1 = inlined_call_operand.vmem [shape: f32[128,128], index: 1, kind: input, shape index: {}]
  %s2 = inlined_call_operand.vmem [shape: f32[128,128], index: 2, kind: input, shape index: {}, may-alias: {2,3}]
  %s3 = inlined_call_operand.vmem [shape: f32[128,128], index: 3, kind: input, shape index: {}, may-alias: {2,3}]
  %s4 = inlined_call_operand.vmem [shape: f32[384,128], index: 4, kind: input, shape index: {}]
  %s5 = inlined_call_operand.vmem [shape: f32[128,128], index: 5, kind: output, shape index: {}]
  %s6 = sld [smem:[#allocation0]]
  $region38: #{psnn_conv_forward.1} parent=0
    _
  %s8 = ssub.s32 1, %s6
  %s9 = scalar_select 0, %s8, %s6
  // Predicated region
  $region2: #{psnn_conv_forward.1} parent=0 // pred_check
    _
  $region3: #{psnn_conv_forward.1} parent=0 // pred_check_branch
    %11 = sbr.rel (0) target = $region5
  $region4: #{psnn_conv_forward.1} parent=0 // pred_region
    _
  $region5: #{psnn_conv_forward.1} parent=0 // pred_fallthru
    _
  // Predicated region
  $region6: #{psnn_conv_forward.1} parent=0 // pred_check
    _
  $region7: #{psnn_conv_forward.1} parent=0 // pred_check_branch
    %13 = sbr.rel (0) target = $region9
  $region8: #{psnn_conv_forward.1} parent=0 // pred_region
    _
  $region9: #{psnn_conv_forward.1} parent=0 // pred_fallthru
    _
  // Predicated region
  $region10: #{psnn_conv_forward.1} parent=0 // pred_check
    _
  $region11: #{psnn_conv_forward.1} parent=0 // pred_check_branch
    %15 = sbr.rel (0) target = $region13
  $region12: #{psnn_conv_forward.1} parent=0 // pred_region
    _
  $region13: #{psnn_conv_forward.1} parent=0 // pred_fallthru
    _
  // Predicated region
  $region14: #{psnn_conv_forward.1} parent=0 // pred_check
    _
  $region15: #{psnn_conv_forward.1} parent=0 // pred_check_branch
    %17 = sbr.rel (0) target = $region17
  $region16: #{psnn_conv_forward.1} parent=0 // pred_region
    _
  $region17: #{psnn_conv_forward.1} parent=0 // pred_fallthru
    _
  // Predicated region
  $region18: #{psnn_conv_forward.1} parent=0 // pred_check
    _
  $region19: #{psnn_conv_forward.1} parent=0 // pred_check_branch
    %19 = sbr.rel (0) target = $region21
  $region20: #{psnn_conv_forward.1} parent=0 // pred_region
    _
  $region21: #{psnn_conv_forward.1} parent=0 // pred_fallthru
    _
  %p20 = scmp.eq.s32.totalorder 0, 0
  // Predicated region
  $region22: #{psnn_conv_forward.1} parent=0 // pred_check
    %p21 = pneg %p20
  $region23: #{psnn_conv_forward.1} parent=0 // pred_check_branch
    %23 = sbr.rel (%p21) target = $region25
  $region24: #{psnn_conv_forward.1} parent=0 // pred_region
    %24 = vst [vmem:[#allocation2] sm:$0xff] 0.0
    %25 = vst [vmem:[#allocation2 + $0x8] sm:$0xff] 0.0
    %26 = vst [vmem:[#allocation2 + $0x10] sm:$0xff] 0.0
    %27 = vst [vmem:[#allocation2 + $0x18] sm:$0xff] 0.0
    %28 = vst [vmem:[#allocation2 + $0x20] sm:$0xff] 0.0
    %29 = vst [vmem:[#allocation2 + $0x28] sm:$0xff] 0.0
    %30 = vst [vmem:[#allocation2 + $0x30] sm:$0xff] 0.0
    %31 = vst [vmem:[#allocation2 + $0x38] sm:$0xff] 0.0
    %32 = vst [vmem:[#allocation2 + $0x40] sm:$0xff] 0.0
    %33 = vst [vmem:[#allocation2 + $0x48] sm:$0xff] 0.0
    %34 = vst [vmem:[#allocation2 + $0x50] sm:$0xff] 0.0
    %35 = vst [vmem:[#allocation2 + $0x58] sm:$0xff] 0.0
    %36 = vst [vmem:[#allocation2 + $0x60] sm:$0xff] 0.0
    %37 = vst [vmem:[#allocation2 + $0x68] sm:$0xff] 0.0
    %38 = vst [vmem:[#allocation2 + $0x70] sm:$0xff] 0.0
    %39 = vst [vmem:[#allocation2 + $0x78] sm:$0xff] 0.0
    %40 = vst [vmem:[#allocation3] sm:$0xff] 0.0
    %41 = vst [vmem:[#allocation3 + $0x8] sm:$0xff] 0.0
    %42 = vst [vmem:[#allocation3 + $0x10] sm:$0xff] 0.0
    %43 = vst [vmem:[#allocation3 + $0x18] sm:$0xff] 0.0
    %44 = vst [vmem:[#allocation3 + $0x20] sm:$0xff] 0.0
    %45 = vst [vmem:[#allocation3 + $0x28] sm:$0xff] 0.0
    %46 = vst [vmem:[#allocation3 + $0x30] sm:$0xff] 0.0
    %47 = vst [vmem:[#allocation3 + $0x38] sm:$0xff] 0.0
    %48 = vst [vmem:[#allocation3 + $0x40] sm:$0xff] 0.0
    %49 = vst [vmem:[#allocation3 + $0x48] sm:$0xff] 0.0
    %50 = vst [vmem:[#allocation3 + $0x50] sm:$0xff] 0.0
    %51 = vst [vmem:[#allocation3 + $0x58] sm:$0xff] 0.0
    %52 = vst [vmem:[#allocation3 + $0x60] sm:$0xff] 0.0
    %53 = vst [vmem:[#allocation3 + $0x68] sm:$0xff] 0.0
    %54 = vst [vmem:[#allocation3 + $0x70] sm:$0xff] 0.0
    %55 = vst [vmem:[#allocation3 + $0x78] sm:$0xff] 0.0
  $region25: #{psnn_conv_forward.1} parent=0 // pred_fallthru
    _
  %v56 = vld [vmem:[%s2] sm:$0xff]
  %v57 = vld [vmem:[%s2 + $0x8] sm:$0xff]
  %v58 = vld [vmem:[%s2 + $0x10] sm:$0xff]
  %v59 = vld [vmem:[%s2 + $0x18] sm:$0xff]
  %v60 = vld [vmem:[%s2 + $0x20] sm:$0xff]
  %v61 = vld [vmem:[%s2 + $0x28] sm:$0xff]
  %v62 = vld [vmem:[%s2 + $0x30] sm:$0xff]
  %v63 = vld [vmem:[%s2 + $0x38] sm:$0xff]
  %v64 = vld [vmem:[%s2 + $0x40] sm:$0xff]
  %v65 = vld [vmem:[%s2 + $0x48] sm:$0xff]
  %v66 = vld [vmem:[%s2 + $0x50] sm:$0xff]
  %v67 = vld [vmem:[%s2 + $0x58] sm:$0xff]
  %v68 = vld [vmem:[%s2 + $0x60] sm:$0xff]
  %v69 = vld [vmem:[%s2 + $0x68] sm:$0xff]
  %v70 = vld [vmem:[%s2 + $0x70] sm:$0xff]
  %v71 = vld [vmem:[%s2 + $0x78] sm:$0xff]
  %v72 = vld [vmem:[#allocation2] sm:$0xff]
  %v73 = vld [vmem:[#allocation2 + $0x8] sm:$0xff]
  %v74 = vld [vmem:[#allocation2 + $0x10] sm:$0xff]
  %v75 = vld [vmem:[#allocation2 + $0x18] sm:$0xff]
  %v76 = vld [vmem:[#allocation2 + $0x20] sm:$0xff]
  %v77 = vld [vmem:[#allocation2 + $0x28] sm:$0xff]
  %v78 = vld [vmem:[#allocation2 + $0x30] sm:$0xff]
  %v79 = vld [vmem:[#allocation2 + $0x38] sm:$0xff]
  %v80 = vld [vmem:[#allocation2 + $0x40] sm:$0xff]
  %v81 = vld [vmem:[#allocation2 + $0x48] sm:$0xff]
  %v82 = vld [vmem:[#allocation2 + $0x50] sm:$0xff]
  %v83 = vld [vmem:[#allocation2 + $0x58] sm:$0xff]
  %v84 = vld [vmem:[#allocation2 + $0x60] sm:$0xff]
  %v85 = vld [vmem:[#allocation2 + $0x68] sm:$0xff]
  %v86 = vld [vmem:[#allocation2 + $0x70] sm:$0xff]
  %v87 = vld [vmem:[#allocation2 + $0x78] sm:$0xff]
  %v88 = vld [vmem:[%s0] sm:$0xff]
  %v89 = vld [vmem:[%s0 + $0x8] sm:$0xff]
  %v90 = vld [vmem:[%s0 + $0x10] sm:$0xff]
  %v91 = vld [vmem:[%s0 + $0x18] sm:$0xff]
  %v92 = vld [vmem:[%s0 + $0x20] sm:$0xff]
  %v93 = vld [vmem:[%s0 + $0x28] sm:$0xff]
  %v94 = vld [vmem:[%s0 + $0x30] sm:$0xff]
  %v95 = vld [vmem:[%s0 + $0x38] sm:$0xff]
  %v96 = vld [vmem:[%s0 + $0x40] sm:$0xff]
  %v97 = vld [vmem:[%s0 + $0x48] sm:$0xff]
  %v98 = vld [vmem:[%s0 + $0x50] sm:$0xff]
  %v99 = vld [vmem:[%s0 + $0x58] sm:$0xff]
  %v100 = vld [vmem:[%s0 + $0x60] sm:$0xff]
  %v101 = vld [vmem:[%s0 + $0x68] sm:$0xff]
  %v102 = vld [vmem:[%s0 + $0x70] sm:$0xff]
  %v103 = vld [vmem:[%s0 + $0x78] sm:$0xff]
  %104 = vmatprep.subr.mxu0 0.0
  %105 = vmatpush1.msra.mxu0 %v56
  %106 = vmatprep.subr.mxu0 0.0
  %107 = vmatpush1.msra.mxu0 %v57
  %108 = vmatprep.subr.mxu0 0.0
  %109 = vmatpush1.msra.mxu0 %v58
  %110 = vmatprep.subr.mxu0 0.0
  %111 = vmatpush1.msra.mxu0 %v59
  %112 = vmatprep.subr.mxu0 0.0
  %113 = vmatpush1.msra.mxu0 %v60
  %114 = vmatprep.subr.mxu0 0.0
  %115 = vmatpush1.msra.mxu0 %v61
  %116 = vmatprep.subr.mxu0 0.0
  %117 = vmatpush1.msra.mxu0 %v62
  %118 = vmatprep.subr.mxu0 0.0
  %119 = vmatpush1.msra.mxu0 %v63
  %120 = vmatprep.subr.mxu0 0.0
  %121 = vmatpush1.msra.mxu0 %v64
  %122 = vmatprep.subr.mxu0 0.0
  %123 = vmatpush1.msra.mxu0 %v65
  %124 = vmatprep.subr.mxu0 0.0
  %125 = vmatpush1.msra.mxu0 %v66
  %126 = vmatprep.subr.mxu0 0.0
  %127 = vmatpush1.msra.mxu0 %v67
  %128 = vmatprep.subr.mxu0 0.0
  %129 = vmatpush1.msra.mxu0 %v68
  %130 = vmatprep.subr.mxu0 0.0
  %131 = vmatpush1.msra.mxu0 %v69
  %132 = vmatprep.subr.mxu0 0.0
  %133 = vmatpush1.msra.mxu0 %v70
  %134 = vmatprep.subr.mxu0 0.0
  %135 = vmatpush1.msra.mxu0 %v71
  %136 = vmatprep.subr.mxu0 0.0
  %137 = vmatpush1.msra.mxu0 0.0
  %138 = vmatprep.subr.mxu0 0.0
  %139 = vmatpush1.msra.mxu0 0.0
  %140 = vmatprep.subr.mxu0 0.0
  %141 = vmatpush1.msra.mxu0 0.0
  %142 = vmatprep.subr.mxu0 0.0
  %143 = vmatpush1.msra.mxu0 0.0
  %144 = vmatprep.subr.mxu0 0.0
  %145 = vmatpush1.msra.mxu0 0.0
  %146 = vmatprep.subr.mxu0 0.0
  %147 = vmatpush1.msra.mxu0 0.0
  %148 = vmatprep.subr.mxu0 0.0
  %149 = vmatpush1.msra.mxu0 0.0
  %150 = vmatprep.subr.mxu0 0.0
  %151 = vmatpush1.msra.mxu0 0.0
  %152 = vmatprep.subr.mxu0 0.0
  %153 = vmatpush1.msra.mxu0 0.0
  %154 = vmatprep.subr.mxu0 0.0
  %155 = vmatpush1.msra.mxu0 0.0
  %156 = vmatprep.subr.mxu0 0.0
  %157 = vmatpush1.msra.mxu0 0.0
  %158 = vmatprep.subr.mxu0 0.0
  %159 = vmatpush1.msra.mxu0 0.0
  %160 = vmatprep.subr.mxu0 0.0
  %161 = vmatpush1.msra.mxu0 0.0
  %162 = vmatprep.subr.mxu0 0.0
  %163 = vmatpush1.msra.mxu0 0.0
  %164 = vmatprep.subr.mxu0 0.0
  %165 = vmatpush1.msra.mxu0 0.0
  %166 = vmatprep.subr.mxu0 0.0
  %167 = vmatpush1.msra.mxu0 0.0
  %168 = vmatprep.mubr.f32.mxu0 0.0
  %169 = vmatmul.mubr.f32.gmra.mrb[0].mxu0 %v88
  %v170 = vpop.f32.mrb[0].mxu0
  %v171 = vadd.f32 0.0, %v170
  %v172 = vpop.f32.mrb[0].mxu0
  %173 = vmatprep.mubr.f32.mxu0 0.0
  %174 = vmatmul.mubr.f32.gmra.mrb[0].mxu0 %v89
  %v175 = vpop.f32.mrb[0].mxu0
  %v176 = vadd.f32 0.0, %v175
  %v177 = vpop.f32.mrb[0].mxu0
  %178 = vmatprep.mubr.f32.mxu0 0.0
  %179 = vmatmul.mubr.f32.gmra.mrb[0].mxu0 %v90
  %v180 = vpop.f32.mrb[0].mxu0
  %v181 = vadd.f32 0.0, %v180
  %v182 = vpop.f32.mrb[0].mxu0
  %183 = vmatprep.mubr.f32.mxu0 0.0
  %184 = vmatmul.mubr.f32.gmra.mrb[0].mxu0 %v91
  %v185 = vpop.f32.mrb[0].mxu0
  %v186 = vadd.f32 0.0, %v185
  %v187 = vpop.f32.mrb[0].mxu0
  %188 = vmatprep.mubr.f32.mxu0 0.0
  %189 = vmatmul.mubr.f32.gmra.mrb[0].mxu0 %v92
  %v190 = vpop.f32.mrb[0].mxu0
  %v191 = vadd.f32 0.0, %v190
  %v192 = vpop.f32.mrb[0].mxu0
  %193 = vmatprep.mubr.f32.mxu0 0.0
  %194 = vmatmul.mubr.f32.gmra.mrb[0].mxu0 %v93
  %v195 = vpop.f32.mrb[0].mxu0
  %v196 = vadd.f32 0.0, %v195
  %v197 = vpop.f32.mrb[0].mxu0
  %198 = vmatprep.mubr.f32.mxu0 0.0
  %199 = vmatmul.mubr.f32.gmra.mrb[0].mxu0 %v94
  %v200 = vpop.f32.mrb[0].mxu0
  %v201 = vadd.f32 0.0, %v200
  %v202 = vpop.f32.mrb[0].mxu0
  %203 = vmatprep.mubr.f32.mxu0 0.0
  %204 = vmatmul.mubr.f32.gmra.mrb[0].mxu0 %v95
  %v205 = vpop.f32.mrb[0].mxu0
  %v206 = vadd.f32 0.0, %v205
  %v207 = vpop.f32.mrb[0].mxu0
  %208 = vmatprep.mubr.f32.mxu0 0.0
  %209 = vmatmul.mubr.f32.gmra.mrb[0].mxu0 %v96
  %v210 = vpop.f32.mrb[0].mxu0
  %v211 = vadd.f32 0.0, %v210
  %v212 = vpop.f32.mrb[0].mxu0
  %213 = vmatprep.mubr.f32.mxu0 0.0
  %214 = vmatmul.mubr.f32.gmra.mrb[0].mxu0 %v97
  %v215 = vpop.f32.mrb[0].mxu0
  %v216 = vadd.f32 0.0, %v215
  %v217 = vpop.f32.mrb[0].mxu0
  %218 = vmatprep.mubr.f32.mxu0 0.0
  %219 = vmatmul.mubr.f32.gmra.mrb[0].mxu0 %v98
  %v220 = vpop.f32.mrb[0].mxu0
  %v221 = vadd.f32 0.0, %v220
  %v222 = vpop.f32.mrb[0].mxu0
  %223 = vmatprep.mubr.f32.mxu0 0.0
  %224 = vmatmul.mubr.f32.gmra.mrb[0].mxu0 %v99
  %v225 = vpop.f32.mrb[0].mxu0
  %v226 = vadd.f32 0.0, %v225
  %v227 = vpop.f32.mrb[0].mxu0
  %228 = vmatprep.mubr.f32.mxu0 0.0
  %229 = vmatmul.mubr.f32.gmra.mrb[0].mxu0 %v100
  %v230 = vpop.f32.mrb[0].mxu0
  %v231 = vadd.f32 0.0, %v230
  %v232 = vpop.f32.mrb[0].mxu0
  %233 = vmatprep.mubr.f32.mxu0 0.0
  %234 = vmatmul.mubr.f32.gmra.mrb[0].mxu0 %v101
  %v235 = vpop.f32.mrb[0].mxu0
  %v236 = vadd.f32 0.0, %v235
  %v237 = vpop.f32.mrb[0].mxu0
  %238 = vmatprep.mubr.f32.mxu0 0.0
  %239 = vmatmul.mubr.f32.gmra.mrb[0].mxu0 %v102
  %v240 = vpop.f32.mrb[0].mxu0
  %v241 = vadd.f32 0.0, %v240
  %v242 = vpop.f32.mrb[0].mxu0
  %243 = vmatprep.mubr.f32.mxu0 0.0
  %244 = vmatmul.mubr.f32.gmra.mrb[0].mxu0 %v103
  %v245 = vpop.f32.mrb[0].mxu0
  %v246 = vadd.f32 0.0, %v245
  %v247 = vpop.f32.mrb[0].mxu0
  %248 = vdwg.mxu0
  %v249 = vadd.f32 %v72, %v171
  %v250 = vadd.f32 %v73, %v176
  %v251 = vadd.f32 %v74, %v181
  %v252 = vadd.f32 %v75, %v186
  %v253 = vadd.f32 %v76, %v191
  %v254 = vadd.f32 %v77, %v196
  %v255 = vadd.f32 %v78, %v201
  %v256 = vadd.f32 %v79, %v206
  %v257 = vadd.f32 %v80, %v211
  %v258 = vadd.f32 %v81, %v216
  %v259 = vadd.f32 %v82, %v221
  %v260 = vadd.f32 %v83, %v226
  %v261 = vadd.f32 %v84, %v231
  %v262 = vadd.f32 %v85, %v236
  %v263 = vadd.f32 %v86, %v241
  %v264 = vadd.f32 %v87, %v246
  %265 = vst [vmem:[#allocation2] sm:$0xff] %v249
  %266 = vst [vmem:[#allocation2 + $0x8] sm:$0xff] %v250
  %267 = vst [vmem:[#allocation2 + $0x10] sm:$0xff] %v251
  %268 = vst [vmem:[#allocation2 + $0x18] sm:$0xff] %v252
  %269 = vst [vmem:[#allocation2 + $0x20] sm:$0xff] %v253
  %270 = vst [vmem:[#allocation2 + $0x28] sm:$0xff] %v254
  %271 = vst [vmem:[#allocation2 + $0x30] sm:$0xff] %v255
  %272 = vst [vmem:[#allocation2 + $0x38] sm:$0xff] %v256
  %273 = vst [vmem:[#allocation2 + $0x40] sm:$0xff] %v257
  %274 = vst [vmem:[#allocation2 + $0x48] sm:$0xff] %v258
  %275 = vst [vmem:[#allocation2 + $0x50] sm:$0xff] %v259
  %276 = vst [vmem:[#allocation2 + $0x58] sm:$0xff] %v260
  %277 = vst [vmem:[#allocation2 + $0x60] sm:$0xff] %v261
  %278 = vst [vmem:[#allocation2 + $0x68] sm:$0xff] %v262
  %279 = vst [vmem:[#allocation2 + $0x70] sm:$0xff] %v263
  %280 = vst [vmem:[#allocation2 + $0x78] sm:$0xff] %v264
  %v281 = vld [vmem:[#allocation3] sm:$0xff]
  %v282 = vld [vmem:[#allocation3 + $0x8] sm:$0xff]
  %v283 = vld [vmem:[#allocation3 + $0x10] sm:$0xff]
  %v284 = vld [vmem:[#allocation3 + $0x18] sm:$0xff]
  %v285 = vld [vmem:[#allocation3 + $0x20] sm:$0xff]
  %v286 = vld [vmem:[#allocation3 + $0x28] sm:$0xff]
  %v287 = vld [vmem:[#allocation3 + $0x30] sm:$0xff]
  %v288 = vld [vmem:[#allocation3 + $0x38] sm:$0xff]
  %v289 = vld [vmem:[#allocation3 + $0x40] sm:$0xff]
  %v290 = vld [vmem:[#allocation3 + $0x48] sm:$0xff]
  %v291 = vld [vmem:[#allocation3 + $0x50] sm:$0xff]
  %v292 = vld [vmem:[#allocation3 + $0x58] sm:$0xff]
  %v293 = vld [vmem:[#allocation3 + $0x60] sm:$0xff]
  %v294 = vld [vmem:[#allocation3 + $0x68] sm:$0xff]
  %v295 = vld [vmem:[#allocation3 + $0x70] sm:$0xff]
  %v296 = vld [vmem:[#allocation3 + $0x78] sm:$0xff]
  %v297 = vld [vmem:[%s1] sm:$0xff]
  %v298 = vld [vmem:[%s1 + $0x8] sm:$0xff]
  %v299 = vld [vmem:[%s1 + $0x10] sm:$0xff]
  %v300 = vld [vmem:[%s1 + $0x18] sm:$0xff]
  %v301 = vld [vmem:[%s1 + $0x20] sm:$0xff]
  %v302 = vld [vmem:[%s1 + $0x28] sm:$0xff]
  %v303 = vld [vmem:[%s1 + $0x30] sm:$0xff]
  %v304 = vld [vmem:[%s1 + $0x38] sm:$0xff]
  %v305 = vld [vmem:[%s1 + $0x40] sm:$0xff]
  %v306 = vld [vmem:[%s1 + $0x48] sm:$0xff]
  %v307 = vld [vmem:[%s1 + $0x50] sm:$0xff]
  %v308 = vld [vmem:[%s1 + $0x58] sm:$0xff]
  %v309 = vld [vmem:[%s1 + $0x60] sm:$0xff]
  %v310 = vld [vmem:[%s1 + $0x68] sm:$0xff]
  %v311 = vld [vmem:[%s1 + $0x70] sm:$0xff]
  %v312 = vld [vmem:[%s1 + $0x78] sm:$0xff]
  %313 = vmatprep.subr.mxu0 0.0
  %314 = vmatpush1.msra.mxu0 %v56
  %315 = vmatprep.subr.mxu0 0.0
  %316 = vmatpush1.msra.mxu0 %v57
  %317 = vmatprep.subr.mxu0 0.0
  %318 = vmatpush1.msra.mxu0 %v58
  %319 = vmatprep.subr.mxu0 0.0
  %320 = vmatpush1.msra.mxu0 %v59
  %321 = vmatprep.subr.mxu0 0.0
  %322 = vmatpush1.msra.mxu0 %v60
  %323 = vmatprep.subr.mxu0 0.0
  %324 = vmatpush1.msra.mxu0 %v61
  %325 = vmatprep.subr.mxu0 0.0
  %326 = vmatpush1.msra.mxu0 %v62
  %327 = vmatprep.subr.mxu0 0.0
  %328 = vmatpush1.msra.mxu0 %v63
  %329 = vmatprep.subr.mxu0 0.0
  %330 = vmatpush1.msra.mxu0 %v64
  %331 = vmatprep.subr.mxu0 0.0
  %332 = vmatpush1.msra.mxu0 %v65
  %333 = vmatprep.subr.mxu0 0.0
  %334 = vmatpush1.msra.mxu0 %v66
  %335 = vmatprep.subr.mxu0 0.0
  %336 = vmatpush1.msra.mxu0 %v67
  %337 = vmatprep.subr.mxu0 0.0
  %338 = vmatpush1.msra.mxu0 %v68
  %339 = vmatprep.subr.mxu0 0.0
  %340 = vmatpush1.msra.mxu0 %v69
  %341 = vmatprep.subr.mxu0 0.0
  %342 = vmatpush1.msra.mxu0 %v70
  %343 = vmatprep.subr.mxu0 0.0
  %344 = vmatpush1.msra.mxu0 %v71
  %345 = vmatprep.subr.mxu0 0.0
  %346 = vmatpush1.msra.mxu0 0.0
  %347 = vmatprep.subr.mxu0 0.0
  %348 = vmatpush1.msra.mxu0 0.0
  %349 = vmatprep.subr.mxu0 0.0
  %350 = vmatpush1.msra.mxu0 0.0
  %351 = vmatprep.subr.mxu0 0.0
  %352 = vmatpush1.msra.mxu0 0.0
  %353 = vmatprep.subr.mxu0 0.0
  %354 = vmatpush1.msra.mxu0 0.0
  %355 = vmatprep.subr.mxu0 0.0
  %356 = vmatpush1.msra.mxu0 0.0
  %357 = vmatprep.subr.mxu0 0.0
  %358 = vmatpush1.msra.mxu0 0.0
  %359 = vmatprep.subr.mxu0 0.0
  %360 = vmatpush1.msra.mxu0 0.0
  %361 = vmatprep.subr.mxu0 0.0
  %362 = vmatpush1.msra.mxu0 0.0
  %363 = vmatprep.subr.mxu0 0.0
  %364 = vmatpush1.msra.mxu0 0.0
  %365 = vmatprep.subr.mxu0 0.0
  %366 = vmatpush1.msra.mxu0 0.0
  %367 = vmatprep.subr.mxu0 0.0
  %368 = vmatpush1.msra.mxu0 0.0
  %369 = vmatprep.subr.mxu0 0.0
  %370 = vmatpush1.msra.mxu0 0.0
  %371 = vmatprep.subr.mxu0 0.0
  %372 = vmatpush1.msra.mxu0 0.0
  %373 = vmatprep.subr.mxu0 0.0
  %374 = vmatpush1.msra.mxu0 0.0
  %375 = vmatprep.subr.mxu0 0.0
  %376 = vmatpush1.msra.mxu0 0.0
  %377 = vmatprep.mubr.f32.mxu0 0.0
  %378 = vmatmul.mubr.f32.gmra.mrb[0].mxu0 %v297
  %v379 = vpop.f32.mrb[0].mxu0
  %v380 = vadd.f32 0.0, %v379
  %v381 = vpop.f32.mrb[0].mxu0
  %382 = vmatprep.mubr.f32.mxu0 0.0
  %383 = vmatmul.mubr.f32.gmra.mrb[0].mxu0 %v298
  %v384 = vpop.f32.mrb[0].mxu0
  %v385 = vadd.f32 0.0, %v384
  %v386 = vpop.f32.mrb[0].mxu0
  %387 = vmatprep.mubr.f32.mxu0 0.0
  %388 = vmatmul.mubr.f32.gmra.mrb[0].mxu0 %v299
  %v389 = vpop.f32.mrb[0].mxu0
  %v390 = vadd.f32 0.0, %v389
  %v391 = vpop.f32.mrb[0].mxu0
  %392 = vmatprep.mubr.f32.mxu0 0.0
  %393 = vmatmul.mubr.f32.gmra.mrb[0].mxu0 %v300
  %v394 = vpop.f32.mrb[0].mxu0
  %v395 = vadd.f32 0.0, %v394
  %v396 = vpop.f32.mrb[0].mxu0
  %397 = vmatprep.mubr.f32.mxu0 0.0
  %398 = vmatmul.mubr.f32.gmra.mrb[0].mxu0 %v301
  %v399 = vpop.f32.mrb[0].mxu0
  %v400 = vadd.f32 0.0, %v399
  %v401 = vpop.f32.mrb[0].mxu0
  %402 = vmatprep.mubr.f32.mxu0 0.0
  %403 = vmatmul.mubr.f32.gmra.mrb[0].mxu0 %v302
  %v404 = vpop.f32.mrb[0].mxu0
  %v405 = vadd.f32 0.0, %v404
  %v406 = vpop.f32.mrb[0].mxu0
  %407 = vmatprep.mubr.f32.mxu0 0.0
  %408 = vmatmul.mubr.f32.gmra.mrb[0].mxu0 %v303
  %v409 = vpop.f32.mrb[0].mxu0
  %v410 = vadd.f32 0.0, %v409
  %v411 = vpop.f32.mrb[0].mxu0
  %412 = vmatprep.mubr.f32.mxu0 0.0
  %413 = vmatmul.mubr.f32.gmra.mrb[0].mxu0 %v304
  %v414 = vpop.f32.mrb[0].mxu0
  %v415 = vadd.f32 0.0, %v414
  %v416 = vpop.f32.mrb[0].mxu0
  %417 = vmatprep.mubr.f32.mxu0 0.0
  %418 = vmatmul.mubr.f32.gmra.mrb[0].mxu0 %v305
  %v419 = vpop.f32.mrb[0].mxu0
  %v420 = vadd.f32 0.0, %v419
  %v421 = vpop.f32.mrb[0].mxu0
  %422 = vmatprep.mubr.f32.mxu0 0.0
  %423 = vmatmul.mubr.f32.gmra.mrb[0].mxu0 %v306
  %v424 = vpop.f32.mrb[0].mxu0
  %v425 = vadd.f32 0.0, %v424
  %v426 = vpop.f32.mrb[0].mxu0
  %427 = vmatprep.mubr.f32.mxu0 0.0
  %428 = vmatmul.mubr.f32.gmra.mrb[0].mxu0 %v307
  %v429 = vpop.f32.mrb[0].mxu0
  %v430 = vadd.f32 0.0, %v429
  %v431 = vpop.f32.mrb[0].mxu0
  %432 = vmatprep.mubr.f32.mxu0 0.0
  %433 = vmatmul.mubr.f32.gmra.mrb[0].mxu0 %v308
  %v434 = vpop.f32.mrb[0].mxu0
  %v435 = vadd.f32 0.0, %v434
  %v436 = vpop.f32.mrb[0].mxu0
  %437 = vmatprep.mubr.f32.mxu0 0.0
  %438 = vmatmul.mubr.f32.gmra.mrb[0].mxu0 %v309
  %v439 = vpop.f32.mrb[0].mxu0
  %v440 = vadd.f32 0.0, %v439
  %v441 = vpop.f32.mrb[0].mxu0
  %442 = vmatprep.mubr.f32.mxu0 0.0
  %443 = vmatmul.mubr.f32.gmra.mrb[0].mxu0 %v310
  %v444 = vpop.f32.mrb[0].mxu0
  %v445 = vadd.f32 0.0, %v444
  %v446 = vpop.f32.mrb[0].mxu0
  %447 = vmatprep.mubr.f32.mxu0 0.0
  %448 = vmatmul.mubr.f32.gmra.mrb[0].mxu0 %v311
  %v449 = vpop.f32.mrb[0].mxu0
  %v450 = vadd.f32 0.0, %v449
  %v451 = vpop.f32.mrb[0].mxu0
  %452 = vmatprep.mubr.f32.mxu0 0.0
  %453 = vmatmul.mubr.f32.gmra.mrb[0].mxu0 %v312
  %v454 = vpop.f32.mrb[0].mxu0
  %v455 = vadd.f32 0.0, %v454
  %v456 = vpop.f32.mrb[0].mxu0
  %457 = vdwg.mxu0
  %v458 = vadd.f32 %v281, %v380
  %v459 = vadd.f32 %v282, %v385
  %v460 = vadd.f32 %v283, %v390
  %v461 = vadd.f32 %v284, %v395
  %v462 = vadd.f32 %v285, %v400
  %v463 = vadd.f32 %v286, %v405
  %v464 = vadd.f32 %v287, %v410
  %v465 = vadd.f32 %v288, %v415
  %v466 = vadd.f32 %v289, %v420
  %v467 = vadd.f32 %v290, %v425
  %v468 = vadd.f32 %v291, %v430
  %v469 = vadd.f32 %v292, %v435
  %v470 = vadd.f32 %v293, %v440
  %v471 = vadd.f32 %v294, %v445
  %v472 = vadd.f32 %v295, %v450
  %v473 = vadd.f32 %v296, %v455
  %474 = vst [vmem:[#allocation3] sm:$0xff] %v458
  %475 = vst [vmem:[#allocation3 + $0x8] sm:$0xff] %v459
  %476 = vst [vmem:[#allocation3 + $0x10] sm:$0xff] %v460
  %477 = vst [vmem:[#allocation3 + $0x18] sm:$0xff] %v461
  %478 = vst [vmem:[#allocation3 + $0x20] sm:$0xff] %v462
  %479 = vst [vmem:[#allocation3 + $0x28] sm:$0xff] %v463
  %480 = vst [vmem:[#allocation3 + $0x30] sm:$0xff] %v464
  %481 = vst [vmem:[#allocation3 + $0x38] sm:$0xff] %v465
  %482 = vst [vmem:[#allocation3 + $0x40] sm:$0xff] %v466
  %483 = vst [vmem:[#allocation3 + $0x48] sm:$0xff] %v467
  %484 = vst [vmem:[#allocation3 + $0x50] sm:$0xff] %v468
  %485 = vst [vmem:[#allocation3 + $0x58] sm:$0xff] %v469
  %486 = vst [vmem:[#allocation3 + $0x60] sm:$0xff] %v470
  %487 = vst [vmem:[#allocation3 + $0x68] sm:$0xff] %v471
  %488 = vst [vmem:[#allocation3 + $0x70] sm:$0xff] %v472
  %489 = vst [vmem:[#allocation3 + $0x78] sm:$0xff] %v473
  // Predicated region
  $region26: #{psnn_conv_forward.1} parent=0 // pred_check
    %p490 = pneg %p20
  $region27: #{psnn_conv_forward.1} parent=0 // pred_check_branch
    %492 = sbr.rel (%p490) target = $region29
  $region28: #{psnn_conv_forward.1} parent=0 // pred_region
    %v493 = vld [vmem:[%s3] sm:$0xff]
    %v494 = vld [vmem:[%s3 + $0x8] sm:$0xff]
    %v495 = vld [vmem:[%s3 + $0x10] sm:$0xff]
    %v496 = vld [vmem:[%s3 + $0x18] sm:$0xff]
    %v497 = vld [vmem:[%s3 + $0x20] sm:$0xff]
    %v498 = vld [vmem:[%s3 + $0x28] sm:$0xff]
    %v499 = vld [vmem:[%s3 + $0x30] sm:$0xff]
    %v500 = vld [vmem:[%s3 + $0x38] sm:$0xff]
    %v501 = vld [vmem:[%s3 + $0x40] sm:$0xff]
    %v502 = vld [vmem:[%s3 + $0x48] sm:$0xff]
    %v503 = vld [vmem:[%s3 + $0x50] sm:$0xff]
    %v504 = vld [vmem:[%s3 + $0x58] sm:$0xff]
    %v505 = vld [vmem:[%s3 + $0x60] sm:$0xff]
    %v506 = vld [vmem:[%s3 + $0x68] sm:$0xff]
    %v507 = vld [vmem:[%s3 + $0x70] sm:$0xff]
    %v508 = vld [vmem:[%s3 + $0x78] sm:$0xff]
    %v509 = vld [vmem:[#allocation2] sm:$0xff]
    %v510 = vld [vmem:[#allocation2 + $0x8] sm:$0xff]
    %v511 = vld [vmem:[#allocation2 + $0x10] sm:$0xff]
    %v512 = vld [vmem:[#allocation2 + $0x18] sm:$0xff]
    %v513 = vld [vmem:[#allocation2 + $0x20] sm:$0xff]
    %v514 = vld [vmem:[#allocation2 + $0x28] sm:$0xff]
    %v515 = vld [vmem:[#allocation2 + $0x30] sm:$0xff]
    %v516 = vld [vmem:[#allocation2 + $0x38] sm:$0xff]
    %v517 = vld [vmem:[#allocation2 + $0x40] sm:$0xff]
    %v518 = vld [vmem:[#allocation2 + $0x48] sm:$0xff]
    %v519 = vld [vmem:[#allocation2 + $0x50] sm:$0xff]
    %v520 = vld [vmem:[#allocation2 + $0x58] sm:$0xff]
    %v521 = vld [vmem:[#allocation2 + $0x60] sm:$0xff]
    %v522 = vld [vmem:[#allocation2 + $0x68] sm:$0xff]
    %v523 = vld [vmem:[#allocation2 + $0x70] sm:$0xff]
    %v524 = vld [vmem:[#allocation2 + $0x78] sm:$0xff]
    %v525 = vld [vmem:[#allocation3] sm:$0xff]
    %v526 = vld [vmem:[#allocation3 + $0x8] sm:$0xff]
    %v527 = vld [vmem:[#allocation3 + $0x10] sm:$0xff]
    %v528 = vld [vmem:[#allocation3 + $0x18] sm:$0xff]
    %v529 = vld [vmem:[#allocation3 + $0x20] sm:$0xff]
    %v530 = vld [vmem:[#allocation3 + $0x28] sm:$0xff]
    %v531 = vld [vmem:[#allocation3 + $0x30] sm:$0xff]
    %v532 = vld [vmem:[#allocation3 + $0x38] sm:$0xff]
    %v533 = vld [vmem:[#allocation3 + $0x40] sm:$0xff]
    %v534 = vld [vmem:[#allocation3 + $0x48] sm:$0xff]
    %v535 = vld [vmem:[#allocation3 + $0x50] sm:$0xff]
    %v536 = vld [vmem:[#allocation3 + $0x58] sm:$0xff]
    %v537 = vld [vmem:[#allocation3 + $0x60] sm:$0xff]
    %v538 = vld [vmem:[#allocation3 + $0x68] sm:$0xff]
    %v539 = vld [vmem:[#allocation3 + $0x70] sm:$0xff]
    %v540 = vld [vmem:[#allocation3 + $0x78] sm:$0xff]
    %v541 = vld [vmem:[%s4] sm:$0xff]
    %v542 = vld [vmem:[%s4 + $0x8] sm:$0xff]
    %v543 = vld [vmem:[%s4 + $0x10] sm:$0xff]
    %v544 = vld [vmem:[%s4 + $0x18] sm:$0xff]
    %v545 = vld [vmem:[%s4 + $0x20] sm:$0xff]
    %v546 = vld [vmem:[%s4 + $0x28] sm:$0xff]
    %v547 = vld [vmem:[%s4 + $0x30] sm:$0xff]
    %v548 = vld [vmem:[%s4 + $0x38] sm:$0xff]
    %v549 = vld [vmem:[%s4 + $0x40] sm:$0xff]
    %v550 = vld [vmem:[%s4 + $0x48] sm:$0xff]
    %v551 = vld [vmem:[%s4 + $0x50] sm:$0xff]
    %v552 = vld [vmem:[%s4 + $0x58] sm:$0xff]
    %v553 = vld [vmem:[%s4 + $0x60] sm:$0xff]
    %v554 = vld [vmem:[%s4 + $0x68] sm:$0xff]
    %v555 = vld [vmem:[%s4 + $0x70] sm:$0xff]
    %v556 = vld [vmem:[%s4 + $0x78] sm:$0xff]
    %v557 = vld [vmem:[%s4 + $0x80] sm:$0xff]
    %v558 = vld [vmem:[%s4 + $0x88] sm:$0xff]
    %v559 = vld [vmem:[%s4 + $0x90] sm:$0xff]
    %v560 = vld [vmem:[%s4 + $0x98] sm:$0xff]
    %v561 = vld [vmem:[%s4 + $0xa0] sm:$0xff]
    %v562 = vld [vmem:[%s4 + $0xa8] sm:$0xff]
    %v563 = vld [vmem:[%s4 + $0xb0] sm:$0xff]
    %v564 = vld [vmem:[%s4 + $0xb8] sm:$0xff]
    %v565 = vld [vmem:[%s4 + $0xc0] sm:$0xff]
    %v566 = vld [vmem:[%s4 + $0xc8] sm:$0xff]
    %v567 = vld [vmem:[%s4 + $0xd0] sm:$0xff]
    %v568 = vld [vmem:[%s4 + $0xd8] sm:$0xff]
    %v569 = vld [vmem:[%s4 + $0xe0] sm:$0xff]
    %v570 = vld [vmem:[%s4 + $0xe8] sm:$0xff]
    %v571 = vld [vmem:[%s4 + $0xf0] sm:$0xff]
    %v572 = vld [vmem:[%s4 + $0xf8] sm:$0xff]
    %v573 = vld [vmem:[%s4 + $0x100] sm:$0xff]
    %v574 = vld [vmem:[%s4 + $0x108] sm:$0xff]
    %v575 = vld [vmem:[%s4 + $0x110] sm:$0xff]
    %v576 = vld [vmem:[%s4 + $0x118] sm:$0xff]
    %v577 = vld [vmem:[%s4 + $0x120] sm:$0xff]
    %v578 = vld [vmem:[%s4 + $0x128] sm:$0xff]
    %v579 = vld [vmem:[%s4 + $0x130] sm:$0xff]
    %v580 = vld [vmem:[%s4 + $0x138] sm:$0xff]
    %v581 = vld [vmem:[%s4 + $0x140] sm:$0xff]
    %v582 = vld [vmem:[%s4 + $0x148] sm:$0xff]
    %v583 = vld [vmem:[%s4 + $0x150] sm:$0xff]
    %v584 = vld [vmem:[%s4 + $0x158] sm:$0xff]
    %v585 = vld [vmem:[%s4 + $0x160] sm:$0xff]
    %v586 = vld [vmem:[%s4 + $0x168] sm:$0xff]
    %v587 = vld [vmem:[%s4 + $0x170] sm:$0xff]
    %v588 = vld [vmem:[%s4 + $0x178] sm:$0xff]
    %589 = vmatprep.subr.mxu0 0.0
    %590 = vmatpush1.msra.mxu0 %v541
    %591 = vmatprep.subr.mxu0 0.0
    %592 = vmatpush1.msra.mxu0 %v542
    %593 = vmatprep.subr.mxu0 0.0
    %594 = vmatpush1.msra.mxu0 %v543
    %595 = vmatprep.subr.mxu0 0.0
    %596 = vmatpush1.msra.mxu0 %v544
    %597 = vmatprep.subr.mxu0 0.0
    %598 = vmatpush1.msra.mxu0 %v545
    %599 = vmatprep.subr.mxu0 0.0
    %600 = vmatpush1.msra.mxu0 %v546
    %601 = vmatprep.subr.mxu0 0.0
    %602 = vmatpush1.msra.mxu0 %v547
    %603 = vmatprep.subr.mxu0 0.0
    %604 = vmatpush1.msra.mxu0 %v548
    %605 = vmatprep.subr.mxu0 0.0
    %606 = vmatpush1.msra.mxu0 %v549
    %607 = vmatprep.subr.mxu0 0.0
    %608 = vmatpush1.msra.mxu0 %v550
    %609 = vmatprep.subr.mxu0 0.0
    %610 = vmatpush1.msra.mxu0 %v551
    %611 = vmatprep.subr.mxu0 0.0
    %612 = vmatpush1.msra.mxu0 %v552
    %613 = vmatprep.subr.mxu0 0.0
    %614 = vmatpush1.msra.mxu0 %v553
    %615 = vmatprep.subr.mxu0 0.0
    %616 = vmatpush1.msra.mxu0 %v554
    %617 = vmatprep.subr.mxu0 0.0
    %618 = vmatpush1.msra.mxu0 %v555
    %619 = vmatprep.subr.mxu0 0.0
    %620 = vmatpush1.msra.mxu0 %v556
    %621 = vmatprep.subr.mxu0 0.0
    %622 = vmatpush1.msra.mxu0 %v557
    %623 = vmatprep.subr.mxu0 0.0
    %624 = vmatpush1.msra.mxu0 %v558
    %625 = vmatprep.subr.mxu0 0.0
    %626 = vmatpush1.msra.mxu0 %v559
    %627 = vmatprep.subr.mxu0 0.0
    %628 = vmatpush1.msra.mxu0 %v560
    %629 = vmatprep.subr.mxu0 0.0
    %630 = vmatpush1.msra.mxu0 %v561
    %631 = vmatprep.subr.mxu0 0.0
    %632 = vmatpush1.msra.mxu0 %v562
    %633 = vmatprep.subr.mxu0 0.0
    %634 = vmatpush1.msra.mxu0 %v563
    %635 = vmatprep.subr.mxu0 0.0
    %636 = vmatpush1.msra.mxu0 %v564
    %637 = vmatprep.subr.mxu0 0.0
    %638 = vmatpush1.msra.mxu0 %v565
    %639 = vmatprep.subr.mxu0 0.0
    %640 = vmatpush1.msra.mxu0 %v566
    %641 = vmatprep.subr.mxu0 0.0
    %642 = vmatpush1.msra.mxu0 %v567
    %643 = vmatprep.subr.mxu0 0.0
    %644 = vmatpush1.msra.mxu0 %v568
    %645 = vmatprep.subr.mxu0 0.0
    %646 = vmatpush1.msra.mxu0 %v569
    %647 = vmatprep.subr.mxu0 0.0
    %648 = vmatpush1.msra.mxu0 %v570
    %649 = vmatprep.subr.mxu0 0.0
    %650 = vmatpush1.msra.mxu0 %v571
    %651 = vmatprep.subr.mxu0 0.0
    %652 = vmatpush1.msra.mxu0 %v572
    %653 = vmatprep.mubr.f32.mxu0 %v509
    %654 = vmatmul.mubr.f32.gmra.mrb[0].mxu0 %v493
    %v655 = vpop.f32.mrb[0].mxu0
    %v656 = vadd.f32 0.0, %v655
    %v657 = vpop.f32.mrb[0].mxu0
    %658 = vmatprep.mubr.f32.mxu0 %v510
    %659 = vmatmul.mubr.f32.gmra.mrb[0].mxu0 %v494
    %v660 = vpop.f32.mrb[0].mxu0
    %v661 = vadd.f32 0.0, %v660
    %v662 = vpop.f32.mrb[0].mxu0
    %663 = vmatprep.mubr.f32.mxu0 %v511
    %664 = vmatmul.mubr.f32.gmra.mrb[0].mxu0 %v495
    %v665 = vpop.f32.mrb[0].mxu0
    %v666 = vadd.f32 0.0, %v665
    %v667 = vpop.f32.mrb[0].mxu0
    %668 = vmatprep.mubr.f32.mxu0 %v512
    %669 = vmatmul.mubr.f32.gmra.mrb[0].mxu0 %v496
    %v670 = vpop.f32.mrb[0].mxu0
    %v671 = vadd.f32 0.0, %v670
    %v672 = vpop.f32.mrb[0].mxu0
    %673 = vmatprep.mubr.f32.mxu0 %v513
    %674 = vmatmul.mubr.f32.gmra.mrb[0].mxu0 %v497
    %v675 = vpop.f32.mrb[0].mxu0
    %v676 = vadd.f32 0.0, %v675
    %v677 = vpop.f32.mrb[0].mxu0
    %678 = vmatprep.mubr.f32.mxu0 %v514
    %679 = vmatmul.mubr.f32.gmra.mrb[0].mxu0 %v498
    %v680 = vpop.f32.mrb[0].mxu0
    %v681 = vadd.f32 0.0, %v680
    %v682 = vpop.f32.mrb[0].mxu0
    %683 = vmatprep.mubr.f32.mxu0 %v515
    %684 = vmatmul.mubr.f32.gmra.mrb[0].mxu0 %v499
    %v685 = vpop.f32.mrb[0].mxu0
    %v686 = vadd.f32 0.0, %v685
    %v687 = vpop.f32.mrb[0].mxu0
    %688 = vmatprep.mubr.f32.mxu0 %v516
    %689 = vmatmul.mubr.f32.gmra.mrb[0].mxu0 %v500
    %v690 = vpop.f32.mrb[0].mxu0
    %v691 = vadd.f32 0.0, %v690
    %v692 = vpop.f32.mrb[0].mxu0
    %693 = vmatprep.mubr.f32.mxu0 %v517
    %694 = vmatmul.mubr.f32.gmra.mrb[0].mxu0 %v501
    %v695 = vpop.f32.mrb[0].mxu0
    %v696 = vadd.f32 0.0, %v695
    %v697 = vpop.f32.mrb[0].mxu0
    %698 = vmatprep.mubr.f32.mxu0 %v518
    %699 = vmatmul.mubr.f32.gmra.mrb[0].mxu0 %v502
    %v700 = vpop.f32.mrb[0].mxu0
    %v701 = vadd.f32 0.0, %v700
    %v702 = vpop.f32.mrb[0].mxu0
    %703 = vmatprep.mubr.f32.mxu0 %v519
    %704 = vmatmul.mubr.f32.gmra.mrb[0].mxu0 %v503
    %v705 = vpop.f32.mrb[0].mxu0
    %v706 = vadd.f32 0.0, %v705
    %v707 = vpop.f32.mrb[0].mxu0
    %708 = vmatprep.mubr.f32.mxu0 %v520
    %709 = vmatmul.mubr.f32.gmra.mrb[0].mxu0 %v504
    %v710 = vpop.f32.mrb[0].mxu0
    %v711 = vadd.f32 0.0, %v710
    %v712 = vpop.f32.mrb[0].mxu0
    %713 = vmatprep.mubr.f32.mxu0 %v521
    %714 = vmatmul.mubr.f32.gmra.mrb[0].mxu0 %v505
    %v715 = vpop.f32.mrb[0].mxu0
    %v716 = vadd.f32 0.0, %v715
    %v717 = vpop.f32.mrb[0].mxu0
    %718 = vmatprep.mubr.f32.mxu0 %v522
    %719 = vmatmul.mubr.f32.gmra.mrb[0].mxu0 %v506
    %v720 = vpop.f32.mrb[0].mxu0
    %v721 = vadd.f32 0.0, %v720
    %v722 = vpop.f32.mrb[0].mxu0
    %723 = vmatprep.mubr.f32.mxu0 %v523
    %724 = vmatmul.mubr.f32.gmra.mrb[0].mxu0 %v507
    %v725 = vpop.f32.mrb[0].mxu0
    %v726 = vadd.f32 0.0, %v725
    %v727 = vpop.f32.mrb[0].mxu0
    %728 = vmatprep.mubr.f32.mxu0 %v524
    %729 = vmatmul.mubr.f32.gmra.mrb[0].mxu0 %v508
    %v730 = vpop.f32.mrb[0].mxu0
    %v731 = vadd.f32 0.0, %v730
    %v732 = vpop.f32.mrb[0].mxu0
    %733 = vdwg.mxu0
    %734 = vmatprep.subr.mxu0 0.0
    %735 = vmatpush1.msra.mxu0 %v573
    %736 = vmatprep.subr.mxu0 0.0
    %737 = vmatpush1.msra.mxu0 %v574
    %738 = vmatprep.subr.mxu0 0.0
    %739 = vmatpush1.msra.mxu0 %v575
    %740 = vmatprep.subr.mxu0 0.0
    %741 = vmatpush1.msra.mxu0 %v576
    %742 = vmatprep.subr.mxu0 0.0
    %743 = vmatpush1.msra.mxu0 %v577
    %744 = vmatprep.subr.mxu0 0.0
    %745 = vmatpush1.msra.mxu0 %v578
    %746 = vmatprep.subr.mxu0 0.0
    %747 = vmatpush1.msra.mxu0 %v579
    %748 = vmatprep.subr.mxu0 0.0
    %749 = vmatpush1.msra.mxu0 %v580
    %750 = vmatprep.subr.mxu0 0.0
    %751 = vmatpush1.msra.mxu0 %v581
    %752 = vmatprep.subr.mxu0 0.0
    %753 = vmatpush1.msra.mxu0 %v582
    %754 = vmatprep.subr.mxu0 0.0
    %755 = vmatpush1.msra.mxu0 %v583
    %756 = vmatprep.subr.mxu0 0.0
    %757 = vmatpush1.msra.mxu0 %v584
    %758 = vmatprep.subr.mxu0 0.0
    %759 = vmatpush1.msra.mxu0 %v585
    %760 = vmatprep.subr.mxu0 0.0
    %761 = vmatpush1.msra.mxu0 %v586
    %762 = vmatprep.subr.mxu0 0.0
    %763 = vmatpush1.msra.mxu0 %v587
    %764 = vmatprep.subr.mxu0 0.0
    %765 = vmatpush1.msra.mxu0 %v588
    %766 = vmatprep.subr.mxu0 0.0
    %767 = vmatpush1.msra.mxu0 0.0
    %768 = vmatprep.subr.mxu0 0.0
    %769 = vmatpush1.msra.mxu0 0.0
    %770 = vmatprep.subr.mxu0 0.0
    %771 = vmatpush1.msra.mxu0 0.0
    %772 = vmatprep.subr.mxu0 0.0
    %773 = vmatpush1.msra.mxu0 0.0
    %774 = vmatprep.subr.mxu0 0.0
    %775 = vmatpush1.msra.mxu0 0.0
    %776 = vmatprep.subr.mxu0 0.0
    %777 = vmatpush1.msra.mxu0 0.0
    %778 = vmatprep.subr.mxu0 0.0
    %779 = vmatpush1.msra.mxu0 0.0
    %780 = vmatprep.subr.mxu0 0.0
    %781 = vmatpush1.msra.mxu0 0.0
    %782 = vmatprep.subr.mxu0 0.0
    %783 = vmatpush1.msra.mxu0 0.0
    %784 = vmatprep.subr.mxu0 0.0
    %785 = vmatpush1.msra.mxu0 0.0
    %786 = vmatprep.subr.mxu0 0.0
    %787 = vmatpush1.msra.mxu0 0.0
    %788 = vmatprep.subr.mxu0 0.0
    %789 = vmatpush1.msra.mxu0 0.0
    %790 = vmatprep.subr.mxu0 0.0
    %791 = vmatpush1.msra.mxu0 0.0
    %792 = vmatprep.subr.mxu0 0.0
    %793 = vmatpush1.msra.mxu0 0.0
    %794 = vmatprep.subr.mxu0 0.0
    %795 = vmatpush1.msra.mxu0 0.0
    %796 = vmatprep.subr.mxu0 0.0
    %797 = vmatpush1.msra.mxu0 0.0
    %798 = vmatprep.mubr.f32.mxu0 0.0
    %799 = vmatmul.mubr.f32.gmra.mrb[0].mxu0 %v525
    %v800 = vpop.f32.mrb[0].mxu0
    %v801 = vadd.f32 %v656, %v800
    %v802 = vpop.f32.mrb[0].mxu0
    %803 = vmatprep.mubr.f32.mxu0 0.0
    %804 = vmatmul.mubr.f32.gmra.mrb[0].mxu0 %v526
    %v805 = vpop.f32.mrb[0].mxu0
    %v806 = vadd.f32 %v661, %v805
    %v807 = vpop.f32.mrb[0].mxu0
    %808 = vmatprep.mubr.f32.mxu0 0.0
    %809 = vmatmul.mubr.f32.gmra.mrb[0].mxu0 %v527
    %v810 = vpop.f32.mrb[0].mxu0
    %v811 = vadd.f32 %v666, %v810
    %v812 = vpop.f32.mrb[0].mxu0
    %813 = vmatprep.mubr.f32.mxu0 0.0
    %814 = vmatmul.mubr.f32.gmra.mrb[0].mxu0 %v528
    %v815 = vpop.f32.mrb[0].mxu0
    %v816 = vadd.f32 %v671, %v815
    %v817 = vpop.f32.mrb[0].mxu0
    %818 = vmatprep.mubr.f32.mxu0 0.0
    %819 = vmatmul.mubr.f32.gmra.mrb[0].mxu0 %v529
    %v820 = vpop.f32.mrb[0].mxu0
    %v821 = vadd.f32 %v676, %v820
    %v822 = vpop.f32.mrb[0].mxu0
    %823 = vmatprep.mubr.f32.mxu0 0.0
    %824 = vmatmul.mubr.f32.gmra.mrb[0].mxu0 %v530
    %v825 = vpop.f32.mrb[0].mxu0
    %v826 = vadd.f32 %v681, %v825
    %v827 = vpop.f32.mrb[0].mxu0
    %828 = vmatprep.mubr.f32.mxu0 0.0
    %829 = vmatmul.mubr.f32.gmra.mrb[0].mxu0 %v531
    %v830 = vpop.f32.mrb[0].mxu0
    %v831 = vadd.f32 %v686, %v830
    %v832 = vpop.f32.mrb[0].mxu0
    %833 = vmatprep.mubr.f32.mxu0 0.0
    %834 = vmatmul.mubr.f32.gmra.mrb[0].mxu0 %v532
    %v835 = vpop.f32.mrb[0].mxu0
    %v836 = vadd.f32 %v691, %v835
    %v837 = vpop.f32.mrb[0].mxu0
    %838 = vmatprep.mubr.f32.mxu0 0.0
    %839 = vmatmul.mubr.f32.gmra.mrb[0].mxu0 %v533
    %v840 = vpop.f32.mrb[0].mxu0
    %v841 = vadd.f32 %v696, %v840
    %v842 = vpop.f32.mrb[0].mxu0
    %843 = vmatprep.mubr.f32.mxu0 0.0
    %844 = vmatmul.mubr.f32.gmra.mrb[0].mxu0 %v534
    %v845 = vpop.f32.mrb[0].mxu0
    %v846 = vadd.f32 %v701, %v845
    %v847 = vpop.f32.mrb[0].mxu0
    %848 = vmatprep.mubr.f32.mxu0 0.0
    %849 = vmatmul.mubr.f32.gmra.mrb[0].mxu0 %v535
    %v850 = vpop.f32.mrb[0].mxu0
    %v851 = vadd.f32 %v706, %v850
    %v852 = vpop.f32.mrb[0].mxu0
    %853 = vmatprep.mubr.f32.mxu0 0.0
    %854 = vmatmul.mubr.f32.gmra.mrb[0].mxu0 %v536
    %v855 = vpop.f32.mrb[0].mxu0
    %v856 = vadd.f32 %v711, %v855
    %v857 = vpop.f32.mrb[0].mxu0
    %858 = vmatprep.mubr.f32.mxu0 0.0
    %859 = vmatmul.mubr.f32.gmra.mrb[0].mxu0 %v537
    %v860 = vpop.f32.mrb[0].mxu0
    %v861 = vadd.f32 %v716, %v860
    %v862 = vpop.f32.mrb[0].mxu0
    %863 = vmatprep.mubr.f32.mxu0 0.0
    %864 = vmatmul.mubr.f32.gmra.mrb[0].mxu0 %v538
    %v865 = vpop.f32.mrb[0].mxu0
    %v866 = vadd.f32 %v721, %v865
    %v867 = vpop.f32.mrb[0].mxu0
    %868 = vmatprep.mubr.f32.mxu0 0.0
    %869 = vmatmul.mubr.f32.gmra.mrb[0].mxu0 %v539
    %v870 = vpop.f32.mrb[0].mxu0
    %v871 = vadd.f32 %v726, %v870
    %v872 = vpop.f32.mrb[0].mxu0
    %873 = vmatprep.mubr.f32.mxu0 0.0
    %874 = vmatmul.mubr.f32.gmra.mrb[0].mxu0 %v540
    %v875 = vpop.f32.mrb[0].mxu0
    %v876 = vadd.f32 %v731, %v875
    %v877 = vpop.f32.mrb[0].mxu0
    %878 = vdwg.mxu0
    %879 = vst [vmem:[%s5] sm:$0xff] %v801
    %880 = vst [vmem:[%s5 + $0x8] sm:$0xff] %v806
    %881 = vst [vmem:[%s5 + $0x10] sm:$0xff] %v811
    %882 = vst [vmem:[%s5 + $0x18] sm:$0xff] %v816
    %883 = vst [vmem:[%s5 + $0x20] sm:$0xff] %v821
    %884 = vst [vmem:[%s5 + $0x28] sm:$0xff] %v826
    %885 = vst [vmem:[%s5 + $0x30] sm:$0xff] %v831
    %886 = vst [vmem:[%s5 + $0x38] sm:$0xff] %v836
    %887 = vst [vmem:[%s5 + $0x40] sm:$0xff] %v841
    %888 = vst [vmem:[%s5 + $0x48] sm:$0xff] %v846
    %889 = vst [vmem:[%s5 + $0x50] sm:$0xff] %v851
    %890 = vst [vmem:[%s5 + $0x58] sm:$0xff] %v856
    %891 = vst [vmem:[%s5 + $0x60] sm:$0xff] %v861
    %892 = vst [vmem:[%s5 + $0x68] sm:$0xff] %v866
    %893 = vst [vmem:[%s5 + $0x70] sm:$0xff] %v871
    %894 = vst [vmem:[%s5 + $0x78] sm:$0xff] %v876
  $region29: #{psnn_conv_forward.1} parent=0 // pred_fallthru
    _
  // Predicated region
  $region30: #{psnn_conv_forward.1} parent=0 // pred_check
    _
  $region31: #{psnn_conv_forward.1} parent=0 // pred_check_branch
    %896 = sbr.rel (0) target = $region33
  $region32: #{psnn_conv_forward.1} parent=0 // pred_region
    _
  $region33: #{psnn_conv_forward.1} parent=0 // pred_fallthru
    _
  // Predicated region
  $region34: #{psnn_conv_forward.1} parent=0 // pred_check
    _
  $region35: #{psnn_conv_forward.1} parent=0 // pred_check_branch
    %898 = sbr.rel (0) target = $region37
  $region36: #{psnn_conv_forward.1} parent=0 // pred_region
    _
  $region37: #{psnn_conv_forward.1} parent=0 // pred_fallthru
    _

</llo_original>
